<compile_context>
chip_gen: v6e
topology: v6e:2x2x1
jax: 0.10.0
libtpu: 0.0.40
codegen_flags: <defaults>
</compile_context>

<pallas_src>
import jax
import jax.numpy as jnp
from jax.experimental import pallas as pl
from jax.experimental.pallas import tpu as pltpu


# ----------------------------------------------------------------------------
# Vocabulary construction (mirrors the PyTorch script exactly)
# ----------------------------------------------------------------------------
embedding_size = 2
sentences = ['Kage is Teacher', ' Mazong is Boss', 'Niuzong is Boss',
             'Xiao is student', 'xue is  student']
words = ' '.join(sentences).split()
word_list = list(set(words))
voc_size = len(word_list)          # 9 unique words


# ----------------------------------------------------------------------------
# Pallas kernel: full CBOW forward (mean -> lane-reduce -> broadcast MAC), VPU only
# ----------------------------------------------------------------------------
def cbow_kernel(x_ref, w1_ref, w2t_ref, o_ref):
    # x_ref   : (N, V)  context rows (one-hot in the CBOW use-case; any float works)
    # w1_ref  : (E, V)  input_to_hidden.weight, native PyTorch layout (vocab on lanes)
    # w2t_ref : (E, V)  hidden_to_output.weight transposed (vocab on lanes)
    # o_ref   : (1, V)  output logits
    x = x_ref[...]
    w1 = w1_ref[...]
    w2t = w2t_ref[...]

    n = x.shape[0]          # static
    e_dim = w1.shape[0]     # static (embedding_size = 2)

    # Mean over the context dim FIRST (linearity lets it commute with the linears):
    # one cheap sublane reduce instead of an (N, E) matmul intermediate.
    xbar = jnp.sum(x, axis=0, keepdims=True) * (1.0 / n)                  # (1, V)

    # hidden_e = <xbar, W1[e, :]>   (VPU mul + lane reduce)
    # out     += hidden_e * W2.T[e, :]   (broadcast multiply-add)
    # E = 2, so this statically unrolls to a handful of VPU/XLU bundles; no MXU.
    out = jnp.zeros(o_ref.shape, dtype=jnp.float32)
    for e in range(e_dim):                                                # static unroll
        h_e = jnp.sum(xbar * w1[e:e + 1, :], axis=1, keepdims=True)       # (1, 1)
        out = out + h_e * w2t[e:e + 1, :]                                 # (1, V)

    o_ref[...] = out


def cbow_forward(x, w1, w2):
    """x: (N, voc_size); w1: (emb, voc) [PyTorch layout]; w2: (voc, emb) [PyTorch layout]."""
    _, v = x.shape
    # W1 is consumed in its native (E, V) layout.  W2 needs its vocab dim on lanes
    # for the VPU broadcast-MAC; this 72-byte transpose is the only host-side prep.
    w2_t = jnp.transpose(w2)   # (E, V)

    return pl.pallas_call(
        cbow_kernel,
        out_shape=jax.ShapeDtypeStruct((1, v), jnp.float32),
        in_specs=[
            pl.BlockSpec(memory_space=pltpu.MemorySpace.VMEM),
            pl.BlockSpec(memory_space=pltpu.MemorySpace.VMEM),
            pl.BlockSpec(memory_space=pltpu.MemorySpace.VMEM),
        ],
        out_specs=pl.BlockSpec(memory_space=pltpu.MemorySpace.VMEM),
    )(x, w1, w2_t)


if __name__ == "__main__":
    key = jax.random.PRNGKey(0)
    k_w1, k_w2, k_idx = jax.random.split(key, 3)

    # Deterministic parameter init (Linear layers have no bias), PyTorch layouts:
    #   input_to_hidden.weight : (embedding_size, voc_size)
    #   hidden_to_output.weight: (voc_size, embedding_size)
    w1 = jax.random.uniform(k_w1, (embedding_size, voc_size),
                            dtype=jnp.float32, minval=-0.5, maxval=0.5)
    w2 = jax.random.uniform(k_w2, (voc_size, embedding_size),
                            dtype=jnp.float32, minval=-0.5, maxval=0.5)

    # Context input: N one-hot rows over the vocabulary (CBOW context words).
    n_context = 4
    ctx_idx = jax.random.randint(k_idx, (n_context,), 0, voc_size)
    x = jax.nn.one_hot(ctx_idx, voc_size, dtype=jnp.float32)   # (4, 9)

    out = cbow_forward(x, w1, w2)
    out = jax.block_until_ready(out)

    # Pure-JAX reference check of the same semantics.
    ref = (jnp.mean(x @ w1.T, axis=0, keepdims=True)) @ w2.T
    assert out.shape == (1, voc_size)
    assert jnp.allclose(out, ref, atol=1e-5, rtol=1e-5)

    print("KERNEL_OK")
</pallas_src>

<mosaic_0001>
module attributes {stable_mosaic.version = 11 : i64} {
  func.func @cbow_kernel(%arg0: memref<4x9xf32, #tpu.memory_space<vmem>>, %arg1: memref<2x9xf32, #tpu.memory_space<vmem>>, %arg2: memref<2x9xf32, #tpu.memory_space<vmem>>, %arg3: memref<1x9xf32, #tpu.memory_space<vmem>>) attributes {dimension_semantics = [], scalar_prefetch = 0 : i64, scratch_operands = 0 : i64, tpu.core_type = #tpu.core_type<tc>} {
    %c0 = arith.constant 0 : index
    %c0_0 = arith.constant 0 : index
    %0 = vector.load %arg0[%c0, %c0_0] : memref<4x9xf32, #tpu.memory_space<vmem>>, vector<4x9xf32>
    %c0_1 = arith.constant 0 : index
    %c0_2 = arith.constant 0 : index
    %1 = vector.load %arg1[%c0_1, %c0_2] : memref<2x9xf32, #tpu.memory_space<vmem>>, vector<2x9xf32>
    %c0_3 = arith.constant 0 : index
    %c0_4 = arith.constant 0 : index
    %2 = vector.load %arg2[%c0_3, %c0_4] : memref<2x9xf32, #tpu.memory_space<vmem>>, vector<2x9xf32>
    %cst = arith.constant dense<0.000000e+00> : vector<9xf32>
    %3 = vector.multi_reduction <add>, %0, %cst [0] : vector<4x9xf32> to vector<9xf32>
    %4 = vector.shape_cast %3 : vector<9xf32> to vector<1x9xf32>
    %cst_5 = arith.constant 2.500000e-01 : f32
    %5 = vector.broadcast %cst_5 : f32 to vector<1x9xf32>
    %6 = arith.mulf %4, %5 : vector<1x9xf32>
    %cst_6 = arith.constant 0.000000e+00 : f32
    %7 = vector.broadcast %cst_6 : f32 to vector<1x9xf32>
    %8 = vector.extract_strided_slice %1 {offsets = [0, 0], sizes = [1, 9], strides = [1, 1]} : vector<2x9xf32> to vector<1x9xf32>
    %9 = arith.mulf %6, %8 : vector<1x9xf32>
    %cst_7 = arith.constant dense<0.000000e+00> : vector<1xf32>
    %10 = vector.multi_reduction <add>, %9, %cst_7 [1] : vector<1x9xf32> to vector<1xf32>
    %11 = vector.shape_cast %10 : vector<1xf32> to vector<1x1xf32>
    %12 = vector.extract_strided_slice %2 {offsets = [0, 0], sizes = [1, 9], strides = [1, 1]} : vector<2x9xf32> to vector<1x9xf32>
    %13 = vector.broadcast %11 : vector<1x1xf32> to vector<1x9xf32>
    %14 = arith.mulf %13, %12 : vector<1x9xf32>
    %15 = arith.addf %7, %14 : vector<1x9xf32>
    %16 = vector.extract_strided_slice %1 {offsets = [1, 0], sizes = [1, 9], strides = [1, 1]} : vector<2x9xf32> to vector<1x9xf32>
    %17 = arith.mulf %6, %16 : vector<1x9xf32>
    %cst_8 = arith.constant dense<0.000000e+00> : vector<1xf32>
    %18 = vector.multi_reduction <add>, %17, %cst_8 [1] : vector<1x9xf32> to vector<1xf32>
    %19 = vector.shape_cast %18 : vector<1xf32> to vector<1x1xf32>
    %20 = vector.extract_strided_slice %2 {offsets = [1, 0], sizes = [1, 9], strides = [1, 1]} : vector<2x9xf32> to vector<1x9xf32>
    %21 = vector.broadcast %19 : vector<1x1xf32> to vector<1x9xf32>
    %22 = arith.mulf %21, %20 : vector<1x9xf32>
    %23 = arith.addf %15, %22 : vector<1x9xf32>
    %c0_9 = arith.constant 0 : index
    %c0_10 = arith.constant 0 : index
    %24 = vector.load %arg3[%c0_9, %c0_10] : memref<1x9xf32, #tpu.memory_space<vmem>>, vector<1x9xf32>
    tpu.vector_store %arg3[%c0_9, %c0_10], %23 {strides = array<i32>} : memref<1x9xf32, #tpu.memory_space<vmem>>, vector<1x9xf32>,
    return
  }
}

</mosaic_0001>

<llo_original>
// kernel: tpu_custom_call.1
$region0: #{tpu_custom_call.1}
  #allocation0 [shape = 'u32[]', space=smem, size = 0x4, offset = 0x4, fixed_abs, tag = 'smem constant byte address 0x4 - core index']
  #allocation1 [shape = 'u32[144,128]{1,0:T(1,128)}', space=vmem, size = 0x12000, scoped, tag = 'internal scratch']
  %s0 = inlined_call_operand.hbm [shape: f32[4,9], index: 0, kind: input, shape index: {}]
  %s1 = inlined_call_operand.hbm [shape: f32[2,9], index: 1, kind: input, shape index: {}]
  %s2 = inlined_call_operand.vmem [shape: f32[2,9], index: 2, kind: input, shape index: {}]
  %s3 = inlined_call_operand.hbm [shape: f32[1,9], index: 3, kind: output, shape index: {}]
  %s4 = sld [smem:[#allocation0]]
  $region30: #{tpu_custom_call.1} parent=0
    _
  %s6 = ssub.s32 1, %s4
  %s7 = scalar_select 0, %s6, %s4
  $region1: #{tpu_custom_call.1} parent=0
    #allocation2 [shape = 'u8[2048]{0}', space=vmem, size = 0x800, scoped, tag = 'input window, operand 0, single buffered']
    #allocation3 [shape = 's32[1]{0}', space=sflag, size = 0x4, scoped, tag = 'scoped memory for tpu_custom_call.1']
    #allocation4 [shape = 's32[1]{0}', space=sflag, size = 0x4, scoped, tag = 'scoped memory for tpu_custom_call.1']
    #allocation5 [shape = 'u8[1024]{0}', space=vmem, size = 0x400, scoped, tag = 'input window, operand 1, single buffered']
    #allocation6 [shape = 's32[1]{0}', space=sflag, size = 0x4, scoped, tag = 'scoped memory for tpu_custom_call.1']
    #allocation7 [shape = 'u8[512]{0}', space=vmem, size = 0x400, scoped, tag = 'output window, operand 0, single buffered']
    %8 = vsyncpa [#allocation3], 0
    %9 = vsyncpa [#allocation6], 0
    %10 = vsyncpa [#allocation4], 0
    // Predicated region
    $region2: #{tpu_custom_call.1} parent=1 // pred_check
      _
    $region3: #{tpu_custom_call.1} parent=1 // pred_check_branch
      %12 = sbr.rel (0) target = $region5
    $region4: #{tpu_custom_call.1} parent=1 // pred_region
      %s14 = ssub.s32 64, 64
      %15 = vsyncadd [#allocation3], %s14
      %s17 = sshll.u32 [#allocation2], 4
      %s18 = int_to_ptr.vmem [resolvable:$true] %s17
      %20 = dma.hbm_to_vmem [thread:$0]  %s0, 64, %s18, [#allocation3]
    $region5: #{tpu_custom_call.1} parent=1 // pred_fallthru
      _
    // Predicated region
    $region6: #{tpu_custom_call.1} parent=1 // pred_check
      _
    $region7: #{tpu_custom_call.1} parent=1 // pred_check_branch
      %22 = sbr.rel (0) target = $region9
    $region8: #{tpu_custom_call.1} parent=1 // pred_region
      %s24 = ssub.s32 32, 32
      %25 = vsyncadd [#allocation6], %s24
      %s27 = sshll.u32 [#allocation5], 4
      %s28 = int_to_ptr.vmem [resolvable:$true] %s27
      %30 = dma.hbm_to_vmem [thread:$0]  %s1, 32, %s28, [#allocation6]
    $region9: #{tpu_custom_call.1} parent=1 // pred_fallthru
      _
    // Predicated region
    $region10: #{tpu_custom_call.1} parent=1 // pred_check
      _
    $region11: #{tpu_custom_call.1} parent=1 // pred_check_branch
      %32 = sbr.rel (0) target = $region13
    $region12: #{tpu_custom_call.1} parent=1 // pred_region
      _
    $region13: #{tpu_custom_call.1} parent=1 // pred_fallthru
      _
    // Predicated region
    $region14: #{tpu_custom_call.1} parent=1 // pred_check
      _
    $region15: #{tpu_custom_call.1} parent=1 // pred_check_branch
      %34 = sbr.rel (0) target = $region17
    $region16: #{tpu_custom_call.1} parent=1 // pred_region
      %35 = dma.done [#allocation3], 64
    $region17: #{tpu_custom_call.1} parent=1 // pred_fallthru
      _
    // Predicated region
    $region18: #{tpu_custom_call.1} parent=1 // pred_check
      _
    $region19: #{tpu_custom_call.1} parent=1 // pred_check_branch
      %37 = sbr.rel (0) target = $region21
    $region20: #{tpu_custom_call.1} parent=1 // pred_region
      %38 = dma.done [#allocation6], 32
    $region21: #{tpu_custom_call.1} parent=1 // pred_fallthru
      _
    %v39 = vld [vmem:[#allocation2] sm:$0xf]
    %v40 = vld [vmem:[#allocation5] sm:$0x3]
    %v41 = vld [vmem:[%s2] sm:$0x3]
    %vm42 = vcmask 68608
    %v43 = vsel %vm42, %v39, 0.0
    %v44 = vrot.slane %v43, 4
    %v45 = vadd.f32 %v43, %v44
    %v46 = vrot.slane %v45, 2
    %v47 = vadd.f32 %v45, %v46
    %v48 = vrot.slane %v47, 1
    %v49 = vadd.f32 %v47, %v48
    %v50 = vmul.f32 %v49, 0.25
    %v51 = vmul.f32 %v50, %v40
    %vm52 = vcmask 65536
    %v53 = vsel %vm52, %v51, 0.0
    %54 = vadd.xlane.f32.xlu0 %v53
    %v55 = vpop.xlane.xlu0 %54
    %v56 = vmul.f32 %v55, %v41
    %v57 = vadd.f32 %v56, 0.0
    %vm58 = vcmask 66561
    %v59 = vsel %vm58, %v51, 0.0
    %60 = vadd.xlane.f32.xlu0 %v59
    %v61 = vpop.xlane.xlu0 %60
    %v62 = vmul.f32 %v61, %v41
    %v64 = vrot.slane %v62, 1
    %v66 = vadd.f32 %v57, %v64
    %67 = vst.msk [vmem:[#allocation7] sm:$0x1] %vm52, %v66
    // Predicated region
    $region22: #{tpu_custom_call.1} parent=1 // pred_check
      _
    $region23: #{tpu_custom_call.1} parent=1 // pred_check_branch
      %69 = sbr.rel (0) target = $region25
    $region24: #{tpu_custom_call.1} parent=1 // pred_region
      %s71 = ssub.s32 16, 16
      %72 = vsyncadd [#allocation4], %s71
      %s74 = sshll.u32 [#allocation7], 4
      %s75 = int_to_ptr.vmem [resolvable:$true] %s74
      %77 = dma.vmem_to_hbm [thread:$0]  %s75, 16, %s3, [#allocation4]
    $region25: #{tpu_custom_call.1} parent=1 // pred_fallthru
      _
    // Predicated region
    $region26: #{tpu_custom_call.1} parent=1 // pred_check
      _
    $region27: #{tpu_custom_call.1} parent=1 // pred_check_branch
      %79 = sbr.rel (0) target = $region29
    $region28: #{tpu_custom_call.1} parent=1 // pred_region
      %80 = dma.done [#allocation4], 16
    $region29: #{tpu_custom_call.1} parent=1 // pred_fallthru
      _
    %81 = vsyncpa [#allocation3], 1
    %82 = vsyncpa [#allocation6], 1
    %83 = vsyncpa [#allocation4], 1

</llo_original>
